<compile_context>
chip_gen: v7x
topology: tpu7x:2x2x1
jax: 0.10.0
libtpu: 0.0.40
codegen_flags: <defaults>
</compile_context>

<pallas_src>
import math
import jax
import jax.numpy as jnp
from jax.experimental import pallas as pl
from jax.experimental.pallas import tpu as pltpu


def _round_up(x, m):
    return ((x + m - 1) // m) * m


# ----------------------------------------------------------------------------- kernels
def _make_kernel(lane_dense):
    def kernel(bias_ref, anchor_ref, pos_ref, neg_ref, wt_ref, out_ref):
        # bias_ref: (1,) f32 in SMEM
        # anchor_ref: (T, n_h2)   pos_ref/neg_ref: (T, n_h1)   (stream dtype)
        # wt_ref: (n_h2, n_h1)  == W^T, constant index_map -> resident in VMEM
        # out_ref: (2, T) f32 if lane_dense else (T, 2) f32
        b = bias_ref[0]

        # Shared transform for both branches: ONE MXU matmul, f32 accumulate.
        # u[t, j] = sum_k anchor[t, k] * W[j, k]
        u = jnp.dot(anchor_ref[...], wt_ref[...],
                    preferred_element_type=jnp.float32)          # (T, n_h1) f32
        n_h1 = u.shape[1]

        if lane_dense:
            ones_row = jnp.ones((1, n_h1), jnp.float32)

            def score_row(x_ref):
                prod = x_ref[...].astype(jnp.float32) * u        # (T, n_h1) VPU
                # MXU reduce that also lands the batch dim on lanes:
                #   (1, n_h1) @ (T, n_h1)^T -> (1, T)   (q @ k^T pattern)
                s = jnp.einsum('ok,tk->ot', ones_row, prod,
                               preferred_element_type=jnp.float32)   # (1, T)
                return jax.nn.sigmoid(s + b)

            out_ref[0:1, :] = score_row(pos_ref)                 # lane-dense vst
            out_ref[1:2, :] = score_row(neg_ref)
        else:
            def score_col(x_ref):
                prod = x_ref[...].astype(jnp.float32) * u
                s = jnp.sum(prod, axis=-1, keepdims=True) + b    # (T, 1)
                return jax.nn.sigmoid(s)

            out_ref[:, 0:1] = score_col(pos_ref)
            out_ref[:, 1:2] = score_col(neg_ref)

    return kernel


def _build_call(lane_dense, tile, n_pad, n_h1, n_h2):
    grid = (n_pad // tile,)
    in_specs = [
        pl.BlockSpec(memory_space=pltpu.SMEM),                 # bias scalar
        pl.BlockSpec((tile, n_h2), lambda i: (i, 0)),          # anchor tile
        pl.BlockSpec((tile, n_h1), lambda i: (i, 0)),          # pos tile
        pl.BlockSpec((tile, n_h1), lambda i: (i, 0)),          # neg tile
        pl.BlockSpec((n_h2, n_h1), lambda i: (0, 0)),          # W^T (resident)
    ]
    if lane_dense:
        out_shape = jax.ShapeDtypeStruct((2, n_pad), jnp.float32)
        out_specs = pl.BlockSpec((2, tile), lambda i: (0, i))
    else:
        out_shape = jax.ShapeDtypeStruct((n_pad, 2), jnp.float32)
        out_specs = pl.BlockSpec((tile, 2), lambda i: (i, 0))

    return pl.pallas_call(
        _make_kernel(lane_dense),
        out_shape=out_shape,
        grid=grid,
        in_specs=in_specs,
        out_specs=out_specs,
        compiler_params=pltpu.CompilerParams(
            dimension_semantics=("parallel",),       # 2 TCs on v7x; no-op v5e/v6e
            vmem_limit_bytes=32 * 1024 * 1024),
    )


# ----------------------------------------------------------------------------- wrapper
_VMEM_STREAM_BUDGET = 20 * 1024 * 1024   # double-buffered input tiles + f32 temps
_LANE_DENSE = None                       # resolved on the first (eager) call


def discriminator_forward(anchor_feat, pos_feat, neg_feat, weight, bias,
                          *, tile_n=4096, stream_dtype=jnp.bfloat16):
    """anchor_feat: (N, n_h2), pos_feat/neg_feat: (N, n_h1),
    weight: (1, n_h1, n_h2), bias: (1,).  Returns (sc_pos, sc_neg), each (N,)."""
    global _LANE_DENSE
    N, n_h2 = anchor_feat.shape
    n_h1 = pos_feat.shape[1]

    # Pass W already transposed so the kernel does rowsum(x * (anchor @ W^T)).
    w_t = jnp.transpose(weight.reshape(n_h1, n_h2)).astype(stream_dtype)   # (n_h2, n_h1)

    # ---- tile selection: largest 128-multiple tile within the VMEM budget ----
    itemsize = jnp.dtype(stream_dtype).itemsize
    per_row = 2 * (2 * n_h1 + n_h2) * itemsize + 3 * n_h1 * 4   # 2x-buffered streams + f32 temps
    cap = max(128, (_VMEM_STREAM_BUDGET // per_row) // 128 * 128)
    n128 = _round_up(max(N, 1), 128)
    tile = min(_round_up(max(tile_n, 128), 128), cap, n128)
    n_pad = _round_up(N, tile)
    pad = n_pad - N

    def prep(x):
        x = x.astype(stream_dtype)
        if pad:
            x = jnp.pad(x, ((0, pad), (0, 0)))   # zero rows -> sigmoid(b), sliced off
        return x

    args = (bias.astype(jnp.float32), prep(anchor_feat), prep(pos_feat),
            prep(neg_feat), w_t)

    if _LANE_DENSE is None:
        # Resolve once (eagerly) whether the lane-dense epilogue lowers; if not,
        # fall back to the proven lane-sparse (T, 1) epilogue.
        try:
            out = _build_call(True, tile, n_pad, n_h1, n_h2)(*args)
            jax.block_until_ready(out)
            _LANE_DENSE = True
        except Exception:
            _LANE_DENSE = False
            out = _build_call(False, tile, n_pad, n_h1, n_h2)(*args)
    else:
        out = _build_call(_LANE_DENSE, tile, n_pad, n_h1, n_h2)(*args)

    # torch.squeeze on (N, 1) -> (N,); drop padded rows.
    if _LANE_DENSE:
        return out[0, :N], out[1, :N]
    return out[:N, 0], out[:N, 1]


# ----------------------------------------------------------------------------- init & test
def init_params(key, n_h1, n_h2):
    """Deterministic init matching nn.Bilinear + xavier_uniform_ / zero bias."""
    # PyTorch _calculate_fan_in_and_fan_out on W (1, n_h1, n_h2):
    #   fan_in = n_h1 * n_h2, fan_out = 1 * n_h2
    fan_in = n_h1 * n_h2
    fan_out = 1 * n_h2
    bound = math.sqrt(6.0 / (fan_in + fan_out))
    weight = jax.random.uniform(key, (1, n_h1, n_h2), jnp.float32,
                                minval=-bound, maxval=bound)
    bias = jnp.zeros((1,), jnp.float32)
    return weight, bias


def _reference(x1, x2, weight, bias):
    return jax.nn.sigmoid(
        jnp.einsum('ni,ij,nj->n', x1, weight[0], x2,
                   precision=jax.lax.Precision.HIGHEST) + bias[0])


def _run_case(key, N, n_h1, n_h2, tile_n, stream_dtype, atol):
    k_w, k_a, k_p, k_n = jax.random.split(key, 4)
    weight, bias = init_params(k_w, n_h1, n_h2)
    anchor_feat = jax.random.normal(k_a, (N, n_h2), jnp.float32)
    pos_feat = jax.random.normal(k_p, (N, n_h1), jnp.float32)
    neg_feat = jax.random.normal(k_n, (N, n_h1), jnp.float32)

    sc_pos, sc_neg = discriminator_forward(anchor_feat, pos_feat, neg_feat,
                                           weight, bias, tile_n=tile_n,
                                           stream_dtype=stream_dtype)
    jax.block_until_ready((sc_pos, sc_neg))

    assert sc_pos.shape == (N,) and sc_neg.shape == (N,)
    assert jnp.allclose(sc_pos, _reference(pos_feat, anchor_feat, weight, bias),
                        atol=atol)
    assert jnp.allclose(sc_neg, _reference(neg_feat, anchor_feat, weight, bias),
                        atol=atol)


if __name__ == "__main__":
    key = jax.random.PRNGKey(0)
    k1, k2, k3 = jax.random.split(key, 3)

    # Small case: single tile, symmetric hidden dims, bf16 streaming.
    _run_case(k1, N=8, n_h1=32, n_h2=32, tile_n=4096,
              stream_dtype=jnp.bfloat16, atol=2e-2)
    # Multi-tile case: grid of 3, ragged padding, asymmetric dims (checks W^T).
    _run_case(k2, N=300, n_h1=64, n_h2=32, tile_n=128,
              stream_dtype=jnp.bfloat16, atol=2e-2)
    # f32 escape hatch: tighter tolerance.
    _run_case(k3, N=64, n_h1=64, n_h2=64, tile_n=4096,
              stream_dtype=jnp.float32, atol=1e-4)

    print("KERNEL_OK")
</pallas_src>

<mosaic_0001>
module attributes {stable_mosaic.version = 11 : i64} {
  func.func @kernel(%arg0: i32, %arg1: memref<1xf32, #tpu.memory_space<smem>>, %arg2: memref<128x32xbf16, #tpu.memory_space<vmem>>, %arg3: memref<128x32xbf16, #tpu.memory_space<vmem>>, %arg4: memref<128x32xbf16, #tpu.memory_space<vmem>>, %arg5: memref<32x32xbf16, #tpu.memory_space<vmem>>, %arg6: memref<2x128xf32, #tpu.memory_space<vmem>>) attributes {dimension_semantics = [#tpu.dimension_semantics<parallel>], iteration_bounds = array<i64: 1>, scalar_prefetch = 0 : i64, scratch_operands = 0 : i64, tpu.core_type = #tpu.core_type<tc>, window_params = [{transform_indices = @transform_0, window_bounds = array<i64: 1>}, {transform_indices = @transform_1, window_bounds = array<i64: 128, 32>}, {transform_indices = @transform_2, window_bounds = array<i64: 128, 32>}, {transform_indices = @transform_3, window_bounds = array<i64: 128, 32>}, {pipeline_mode = #tpu.pipeline_mode<synchronous>, transform_indices = @transform_4, window_bounds = array<i64: 32, 32>}, {transform_indices = @transform_5, window_bounds = array<i64: 2, 128>}]} {
    %c0 = arith.constant 0 : index
    %0 = memref.load %arg1[%c0] : memref<1xf32, #tpu.memory_space<smem>>
    %c0_0 = arith.constant 0 : index
    %c0_1 = arith.constant 0 : index
    %1 = vector.load %arg2[%c0_0, %c0_1] : memref<128x32xbf16, #tpu.memory_space<vmem>>, vector<128x32xbf16>
    %c0_2 = arith.constant 0 : index
    %c0_3 = arith.constant 0 : index
    %2 = vector.load %arg5[%c0_2, %c0_3] : memref<32x32xbf16, #tpu.memory_space<vmem>>, vector<32x32xbf16>
    %cst = arith.constant dense<0.000000e+00> : vector<128x32xf32>
    %3 = tpu.matmul %1, %2, %cst {dimension_numbers = #tpu.dot_dimension_numbers<[1], [0], [0], [1], [0, 0, 1, 1], [], []>} : vector<128x32xbf16>, vector<32x32xbf16>, vector<128x32xf32> -> vector<128x32xf32>
    %cst_4 = arith.constant 1.000000e+00 : f32
    %4 = vector.broadcast %cst_4 : f32 to vector<1x32xf32>
    %c0_5 = arith.constant 0 : index
    %c0_6 = arith.constant 0 : index
    %5 = vector.load %arg3[%c0_5, %c0_6] : memref<128x32xbf16, #tpu.memory_space<vmem>>, vector<128x32xbf16>
    %6 = arith.extf %5 : vector<128x32xbf16> to vector<128x32xf32>
    %7 = arith.mulf %6, %3 : vector<128x32xf32>
    "tpu.trace_start"() <{level = 10 : i32, message = "ok,tk->ot"}> : () -> ()
    %cst_7 = arith.constant dense<0.000000e+00> : vector<1x128xf32>
    %8 = tpu.matmul %4, %7, %cst_7 {dimension_numbers = #tpu.dot_dimension_numbers<[1], [1], [0], [0], [0, 0, 1, 0], [], []>} : vector<1x32xf32>, vector<128x32xf32>, vector<1x128xf32> -> vector<1x128xf32>
    "tpu.trace_stop"() : () -> ()
    %9 = vector.broadcast %0 : f32 to vector<1x128xf32>
    %10 = arith.addf %8, %9 : vector<1x128xf32>
    %11 = arith.negf %10 : vector<1x128xf32>
    %12 = math.exp %11 : vector<1x128xf32>
    %cst_8 = arith.constant 1.000000e+00 : f32
    %13 = vector.broadcast %cst_8 : f32 to vector<1x128xf32>
    %14 = arith.addf %13, %12 : vector<1x128xf32>
    %15 = arith.divf %13, %14 : vector<1x128xf32>
    %c0_9 = arith.constant 0 : index
    %c0_10 = arith.constant 0 : index
    %16 = vector.load %arg6[%c0_9, %c0_10] : memref<2x128xf32, #tpu.memory_space<vmem>>, vector<1x128xf32>
    tpu.vector_store %arg6[%c0_9, %c0_10], %15 {strides = array<i32>} : memref<2x128xf32, #tpu.memory_space<vmem>>, vector<1x128xf32>,
    %c0_11 = arith.constant 0 : index
    %c0_12 = arith.constant 0 : index
    %17 = vector.load %arg4[%c0_11, %c0_12] : memref<128x32xbf16, #tpu.memory_space<vmem>>, vector<128x32xbf16>
    %18 = arith.extf %17 : vector<128x32xbf16> to vector<128x32xf32>
    %19 = arith.mulf %18, %3 : vector<128x32xf32>
    "tpu.trace_start"() <{level = 10 : i32, message = "ok,tk->ot"}> : () -> ()
    %cst_13 = arith.constant dense<0.000000e+00> : vector<1x128xf32>
    %20 = tpu.matmul %4, %19, %cst_13 {dimension_numbers = #tpu.dot_dimension_numbers<[1], [1], [0], [0], [0, 0, 1, 0], [], []>} : vector<1x32xf32>, vector<128x32xf32>, vector<1x128xf32> -> vector<1x128xf32>
    "tpu.trace_stop"() : () -> ()
    %21 = vector.broadcast %0 : f32 to vector<1x128xf32>
    %22 = arith.addf %20, %21 : vector<1x128xf32>
    %23 = arith.negf %22 : vector<1x128xf32>
    %24 = math.exp %23 : vector<1x128xf32>
    %cst_14 = arith.constant 1.000000e+00 : f32
    %25 = vector.broadcast %cst_14 : f32 to vector<1x128xf32>
    %26 = arith.addf %25, %24 : vector<1x128xf32>
    %27 = arith.divf %25, %26 : vector<1x128xf32>
    %c1 = arith.constant 1 : index
    %c0_15 = arith.constant 0 : index
    %28 = vector.load %arg6[%c1, %c0_15] : memref<2x128xf32, #tpu.memory_space<vmem>>, vector<1x128xf32>
    tpu.vector_store %arg6[%c1, %c0_15], %27 {strides = array<i32>} : memref<2x128xf32, #tpu.memory_space<vmem>>, vector<1x128xf32>,
    return
  }
  func.func @transform_0(%arg0: i32) -> i32 {
    %c0_i32 = arith.constant 0 : i32
    %c0_i32_0 = arith.constant 0 : i32
    return %c0_i32 : i32
  }
  func.func @transform_1(%arg0: i32) -> (i32, i32) {
    %c0_i32 = arith.constant 0 : i32
    %c0_i32_0 = arith.constant 0 : i32
    return %arg0, %c0_i32 : i32, i32
  }
  func.func @transform_2(%arg0: i32) -> (i32, i32) {
    %c0_i32 = arith.constant 0 : i32
    %c0_i32_0 = arith.constant 0 : i32
    return %arg0, %c0_i32 : i32, i32
  }
  func.func @transform_3(%arg0: i32) -> (i32, i32) {
    %c0_i32 = arith.constant 0 : i32
    %c0_i32_0 = arith.constant 0 : i32
    return %arg0, %c0_i32 : i32, i32
  }
  func.func @transform_4(%arg0: i32) -> (i32, i32) {
    %c0_i32 = arith.constant 0 : i32
    %c0_i32_0 = arith.constant 0 : i32
    %c0_i32_1 = arith.constant 0 : i32
    return %c0_i32, %c0_i32_0 : i32, i32
  }
  func.func @transform_5(%arg0: i32) -> (i32, i32) {
    %c0_i32 = arith.constant 0 : i32
    %c0_i32_0 = arith.constant 0 : i32
    return %c0_i32, %arg0 : i32, i32
  }
}

module attributes {stable_mosaic.version = 11 : i64} {
  func.func @kernel(%arg0: i32, %arg1: memref<1xf32, #tpu.memory_space<smem>>, %arg2: memref<128x32xbf16, #tpu.memory_space<vmem>>, %arg3: memref<128x32xbf16, #tpu.memory_space<vmem>>, %arg4: memref<128x32xbf16, #tpu.memory_space<vmem>>, %arg5: memref<32x32xbf16, #tpu.memory_space<vmem>>, %arg6: memref<128x2xf32, #tpu.memory_space<vmem>>) attributes {dimension_semantics = [#tpu.dimension_semantics<parallel>], iteration_bounds = array<i64: 1>, scalar_prefetch = 0 : i64, scratch_operands = 0 : i64, tpu.core_type = #tpu.core_type<tc>, window_params = [{transform_indices = @transform_0, window_bounds = array<i64: 1>}, {transform_indices = @transform_1, window_bounds = array<i64: 128, 32>}, {transform_indices = @transform_2, window_bounds = array<i64: 128, 32>}, {transform_indices = @transform_3, window_bounds = array<i64: 128, 32>}, {pipeline_mode = #tpu.pipeline_mode<synchronous>, transform_indices = @transform_4, window_bounds = array<i64: 32, 32>}, {transform_indices = @transform_5, window_bounds = array<i64: 128, 2>}]} {
    %c0 = arith.constant 0 : index
    %0 = memref.load %arg1[%c0] : memref<1xf32, #tpu.memory_space<smem>>
    %c0_0 = arith.constant 0 : index
    %c0_1 = arith.constant 0 : index
    %1 = vector.load %arg2[%c0_0, %c0_1] : memref<128x32xbf16, #tpu.memory_space<vmem>>, vector<128x32xbf16>
    %c0_2 = arith.constant 0 : index
    %c0_3 = arith.constant 0 : index
    %2 = vector.load %arg5[%c0_2, %c0_3] : memref<32x32xbf16, #tpu.memory_space<vmem>>, vector<32x32xbf16>
    %cst = arith.constant dense<0.000000e+00> : vector<128x32xf32>
    %3 = tpu.matmul %1, %2, %cst {dimension_numbers = #tpu.dot_dimension_numbers<[1], [0], [0], [1], [0, 0, 1, 1], [], []>} : vector<128x32xbf16>, vector<32x32xbf16>, vector<128x32xf32> -> vector<128x32xf32>
    %c0_4 = arith.constant 0 : index
    %c0_5 = arith.constant 0 : index
    %4 = vector.load %arg3[%c0_4, %c0_5] : memref<128x32xbf16, #tpu.memory_space<vmem>>, vector<128x32xbf16>
    %5 = arith.extf %4 : vector<128x32xbf16> to vector<128x32xf32>
    %6 = arith.mulf %5, %3 : vector<128x32xf32>
    %cst_6 = arith.constant dense<0.000000e+00> : vector<128xf32>
    %7 = vector.multi_reduction <add>, %6, %cst_6 [1] : vector<128x32xf32> to vector<128xf32>
    %8 = vector.shape_cast %7 : vector<128xf32> to vector<128x1xf32>
    %9 = vector.broadcast %0 : f32 to vector<128x1xf32>
    %10 = arith.addf %8, %9 : vector<128x1xf32>
    %11 = arith.negf %10 : vector<128x1xf32>
    %12 = math.exp %11 : vector<128x1xf32>
    %cst_7 = arith.constant 1.000000e+00 : f32
    %13 = vector.broadcast %cst_7 : f32 to vector<128x1xf32>
    %14 = arith.addf %13, %12 : vector<128x1xf32>
    %15 = arith.divf %13, %14 : vector<128x1xf32>
    %c0_8 = arith.constant 0 : index
    %c0_9 = arith.constant 0 : index
    %16 = vector.load %arg6[%c0_8, %c0_9] : memref<128x2xf32, #tpu.memory_space<vmem>>, vector<128x1xf32>
    tpu.vector_store %arg6[%c0_8, %c0_9], %15 {strides = array<i32>} : memref<128x2xf32, #tpu.memory_space<vmem>>, vector<128x1xf32>,
    %c0_10 = arith.constant 0 : index
    %c0_11 = arith.constant 0 : index
    %17 = vector.load %arg4[%c0_10, %c0_11] : memref<128x32xbf16, #tpu.memory_space<vmem>>, vector<128x32xbf16>
    %18 = arith.extf %17 : vector<128x32xbf16> to vector<128x32xf32>
    %19 = arith.mulf %18, %3 : vector<128x32xf32>
    %cst_12 = arith.constant dense<0.000000e+00> : vector<128xf32>
    %20 = vector.multi_reduction <add>, %19, %cst_12 [1] : vector<128x32xf32> to vector<128xf32>
    %21 = vector.shape_cast %20 : vector<128xf32> to vector<128x1xf32>
    %22 = vector.broadcast %0 : f32 to vector<128x1xf32>
    %23 = arith.addf %21, %22 : vector<128x1xf32>
    %24 = arith.negf %23 : vector<128x1xf32>
    %25 = math.exp %24 : vector<128x1xf32>
    %cst_13 = arith.constant 1.000000e+00 : f32
    %26 = vector.broadcast %cst_13 : f32 to vector<128x1xf32>
    %27 = arith.addf %26, %25 : vector<128x1xf32>
    %28 = arith.divf %26, %27 : vector<128x1xf32>
    %c0_14 = arith.constant 0 : index
    %c1 = arith.constant 1 : index
    %29 = vector.load %arg6[%c0_14, %c1] : memref<128x2xf32, #tpu.memory_space<vmem>>, vector<128x1xf32>
    tpu.vector_store %arg6[%c0_14, %c1], %28 {strides = array<i32>} : memref<128x2xf32, #tpu.memory_space<vmem>>, vector<128x1xf32>,
    return
  }
  func.func @transform_0(%arg0: i32) -> i32 {
    %c0_i32 = arith.constant 0 : i32
    %c0_i32_0 = arith.constant 0 : i32
    return %c0_i32 : i32
  }
  func.func @transform_1(%arg0: i32) -> (i32, i32) {
    %c0_i32 = arith.constant 0 : i32
    %c0_i32_0 = arith.constant 0 : i32
    return %arg0, %c0_i32 : i32, i32
  }
  func.func @transform_2(%arg0: i32) -> (i32, i32) {
    %c0_i32 = arith.constant 0 : i32
    %c0_i32_0 = arith.constant 0 : i32
    return %arg0, %c0_i32 : i32, i32
  }
  func.func @transform_3(%arg0: i32) -> (i32, i32) {
    %c0_i32 = arith.constant 0 : i32
    %c0_i32_0 = arith.constant 0 : i32
    return %arg0, %c0_i32 : i32, i32
  }
  func.func @transform_4(%arg0: i32) -> (i32, i32) {
    %c0_i32 = arith.constant 0 : i32
    %c0_i32_0 = arith.constant 0 : i32
    %c0_i32_1 = arith.constant 0 : i32
    return %c0_i32, %c0_i32_0 : i32, i32
  }
  func.func @transform_5(%arg0: i32) -> (i32, i32) {
    %c0_i32 = arith.constant 0 : i32
    %c0_i32_0 = arith.constant 0 : i32
    return %arg0, %c0_i32 : i32, i32
  }
}

</mosaic_0001>

<llo_original>
// kernel: tpu_custom_call.1
$region0: #{tpu_custom_call.1}
  #allocation0 [shape = 'u32[]', space=smem, size = 0x4, offset = 0x4, fixed_abs, tag = 'smem constant byte address 0x4 - core index']
  #allocation1 [shape = 'u32[144,128]{1,0:T(1,128)}', space=vmem, size = 0x12000, scoped, tag = 'internal scratch']
  #allocation2 [shape = 'f32[1]{0:T(128)S(6)}', space=smem, size = 0x200, scoped, tag = 'scoped memory for tpu_custom_call.1']
  %s0 = inlined_call_operand.<no memory space> [shape: f32[1], index: 0, kind: input, shape index: {}]
  %s1 = inlined_call_operand.vmem [shape: bf16[128,32], index: 1, kind: input, shape index: {}]
  %s2 = inlined_call_operand.vmem [shape: bf16[128,32], index: 2, kind: input, shape index: {}]
  %s3 = inlined_call_operand.vmem [shape: bf16[128,32], index: 3, kind: input, shape index: {}]
  %s4 = inlined_call_operand.vmem [shape: bf16[32,32], index: 4, kind: input, shape index: {}]
  %s5 = inlined_call_operand.hbm [shape: f32[2,128], index: 5, kind: output, shape index: {}]
  %s6 = sld [smem:[#allocation0]]
  $region30: #{tpu_custom_call.1} parent=0
    _
  %s8 = ssub.s32 1, %s6
  %s9 = scalar_select 0, %s8, %s6
  %10 = sst [smem:[#allocation2]] %s0
  $region1: #{tpu_custom_call.1} parent=0
    #allocation3 [shape = 'u8[1024]{0}', space=vmem, size = 0x400, scoped, tag = 'output window, operand 0, single buffered']
    #allocation4 [shape = 's32[1]{0}', space=sflag, size = 0x4, scoped, tag = 'scoped memory for tpu_custom_call.1']
    %11 = vsyncpa [#allocation4], 0
    // Predicated region
    $region2: #{tpu_custom_call.1} parent=1 // pred_check
      _
    $region3: #{tpu_custom_call.1} parent=1 // pred_check_branch
      %13 = sbr.rel (0) target = $region5
    $region4: #{tpu_custom_call.1} parent=1 // pred_region
      _
    $region5: #{tpu_custom_call.1} parent=1 // pred_fallthru
      _
    // Predicated region
    $region6: #{tpu_custom_call.1} parent=1 // pred_check
      _
    $region7: #{tpu_custom_call.1} parent=1 // pred_check_branch
      %15 = sbr.rel (0) target = $region9
    $region8: #{tpu_custom_call.1} parent=1 // pred_region
      _
    $region9: #{tpu_custom_call.1} parent=1 // pred_fallthru
      _
    // Predicated region
    $region10: #{tpu_custom_call.1} parent=1 // pred_check
      _
    $region11: #{tpu_custom_call.1} parent=1 // pred_check_branch
      %17 = sbr.rel (0) target = $region13
    $region12: #{tpu_custom_call.1} parent=1 // pred_region
      _
    $region13: #{tpu_custom_call.1} parent=1 // pred_fallthru
      _
    // Predicated region
    $region14: #{tpu_custom_call.1} parent=1 // pred_check
      _
    $region15: #{tpu_custom_call.1} parent=1 // pred_check_branch
      %19 = sbr.rel (0) target = $region17
    $region16: #{tpu_custom_call.1} parent=1 // pred_region
      _
    $region17: #{tpu_custom_call.1} parent=1 // pred_fallthru
      _
    // Predicated region
    $region18: #{tpu_custom_call.1} parent=1 // pred_check
      _
    $region19: #{tpu_custom_call.1} parent=1 // pred_check_branch
      %21 = sbr.rel (0) target = $region21
    $region20: #{tpu_custom_call.1} parent=1 // pred_region
      _
    $region21: #{tpu_custom_call.1} parent=1 // pred_fallthru
      _
    %s23 = sld [smem:[#allocation2]]
    %v24 = vld [vmem:[%s1] sm:$0xf]
    %v25 = vld [vmem:[%s1 + $0x4] sm:$0xf]
    %v26 = vld [vmem:[%s1 + $0x8] sm:$0xf]
    %v27 = vld [vmem:[%s1 + $0xc] sm:$0xf]
    %v28 = vld [vmem:[%s1 + $0x10] sm:$0xf]
    %v29 = vld [vmem:[%s1 + $0x14] sm:$0xf]
    %v30 = vld [vmem:[%s1 + $0x18] sm:$0xf]
    %v31 = vld [vmem:[%s1 + $0x1c] sm:$0xf]
    %v32 = vld [vmem:[%s1 + $0x20] sm:$0xf]
    %v33 = vld [vmem:[%s1 + $0x24] sm:$0xf]
    %v34 = vld [vmem:[%s1 + $0x28] sm:$0xf]
    %v35 = vld [vmem:[%s1 + $0x2c] sm:$0xf]
    %v36 = vld [vmem:[%s1 + $0x30] sm:$0xf]
    %v37 = vld [vmem:[%s1 + $0x34] sm:$0xf]
    %v38 = vld [vmem:[%s1 + $0x38] sm:$0xf]
    %v39 = vld [vmem:[%s1 + $0x3c] sm:$0xf]
    %v40 = vld [vmem:[%s4] sm:$0xf]
    %v41 = vld [vmem:[%s4 + $0x4] sm:$0xf]
    %v42 = vld [vmem:[%s4 + $0x8] sm:$0xf]
    %v43 = vld [vmem:[%s4 + $0xc] sm:$0xf]
    %v60 = vunpack.c.l.b16 %v24
    %v61 = vunpack.c.l.b16 %v25
    %v62 = vunpack.c.l.b16 %v26
    %v63 = vunpack.c.l.b16 %v27
    %v64 = vunpack.c.l.b16 %v28
    %v65 = vunpack.c.l.b16 %v29
    %v66 = vunpack.c.l.b16 %v30
    %v67 = vunpack.c.l.b16 %v31
    %v68 = vunpack.c.l.b16 %v32
    %v69 = vunpack.c.l.b16 %v33
    %v70 = vunpack.c.l.b16 %v34
    %v71 = vunpack.c.l.b16 %v35
    %v72 = vunpack.c.l.b16 %v36
    %v73 = vunpack.c.l.b16 %v37
    %v74 = vunpack.c.l.b16 %v38
    %v75 = vunpack.c.l.b16 %v39
    %v76 = vpack.c.b16 %v61, %v60
    %v77 = vpack.c.b16 %v63, %v62
    %v78 = vpack.c.b16 %v65, %v64
    %v79 = vpack.c.b16 %v67, %v66
    %v80 = vpack.c.b16 %v69, %v68
    %v81 = vpack.c.b16 %v71, %v70
    %v82 = vpack.c.b16 %v73, %v72
    %v83 = vpack.c.b16 %v75, %v74
    %v88 = vunpack.c.l.b16 %v40
    %v89 = vunpack.c.l.b16 %v41
    %v90 = vunpack.c.l.b16 %v42
    %v91 = vunpack.c.l.b16 %v43
    %v92 = vpack.c.b16 %v89, %v88
    %v93 = vpack.c.b16 %v91, %v90
    %vm96 = vcmask 261120
    %v98 = vsel %vm96, %v76, 0
    %v101 = vsel %vm96, %v77, 0
    %v104 = vsel %vm96, %v78, 0
    %v107 = vsel %vm96, %v79, 0
    %v110 = vsel %vm96, %v80, 0
    %v113 = vsel %vm96, %v81, 0
    %v116 = vsel %vm96, %v82, 0
    %v119 = vsel %vm96, %v83, 0
    %121 = vmatprep.subr.bf16.mxu0 0
    %122 = vmatpush1.bf16.msra.mxu0 %v92
    %123 = vmatprep.subr.bf16.mxu0 0
    %124 = vmatpush1.bf16.msra.mxu0 %v93
    %125 = vmatprep.subr.bf16.mxu0 0
    %126 = vmatpush1.bf16.msra.mxu0 0
    %127 = vmatprep.subr.bf16.mxu0 0
    %128 = vmatpush1.bf16.msra.mxu0 0
    %129 = vmatprep.subr.bf16.mxu0 0
    %130 = vmatpush1.bf16.msra.mxu0 0
    %131 = vmatprep.subr.bf16.mxu0 0
    %132 = vmatpush1.bf16.msra.mxu0 0
    %133 = vmatprep.subr.bf16.mxu0 0
    %134 = vmatpush1.bf16.msra.mxu0 0
    %135 = vmatprep.subr.bf16.mxu0 0
    %136 = vmatpush1.bf16.msra.mxu0 0
    %137 = vmatprep.subr.bf16.mxu0 0
    %138 = vmatpush1.bf16.msra.mxu0 0
    %139 = vmatprep.subr.bf16.mxu0 0
    %140 = vmatpush1.bf16.msra.mxu0 0
    %141 = vmatprep.subr.bf16.mxu0 0
    %142 = vmatpush1.bf16.msra.mxu0 0
    %143 = vmatprep.subr.bf16.mxu0 0
    %144 = vmatpush1.bf16.msra.mxu0 0
    %145 = vmatprep.subr.bf16.mxu0 0
    %146 = vmatpush1.bf16.msra.mxu0 0
    %147 = vmatprep.subr.bf16.mxu0 0
    %148 = vmatpush1.bf16.msra.mxu0 0
    %149 = vmatprep.subr.bf16.mxu0 0
    %150 = vmatpush1.bf16.msra.mxu0 0
    %151 = vmatprep.subr.bf16.mxu0 0
    %152 = vmatpush1.bf16.msra.mxu0 0
    %153 = vmatprep.mubr.bf16.mxu0 0
    %154 = vmatmul.mubr.bf16.gmra.mrb[0].mxu0 %v98
    %v155 = vpop.f32.mrb[0].mxu0
    %v156 = vadd.f32 0.0, %v155
    %v157 = vpop.f32.mrb[0].mxu0
    %v158 = vpop.f32.mrb[0].mxu0
    %v159 = vadd.f32 0.0, %v158
    %v160 = vpop.f32.mrb[0].mxu0
    %161 = vmatprep.mubr.bf16.mxu0 0
    %162 = vmatmul.mubr.bf16.gmra.mrb[0].mxu0 %v101
    %v163 = vpop.f32.mrb[0].mxu0
    %v164 = vadd.f32 0.0, %v163
    %v165 = vpop.f32.mrb[0].mxu0
    %v166 = vpop.f32.mrb[0].mxu0
    %v167 = vadd.f32 0.0, %v166
    %v168 = vpop.f32.mrb[0].mxu0
    %169 = vmatprep.mubr.bf16.mxu0 0
    %170 = vmatmul.mubr.bf16.gmra.mrb[0].mxu0 %v104
    %v171 = vpop.f32.mrb[0].mxu0
    %v172 = vadd.f32 0.0, %v171
    %v173 = vpop.f32.mrb[0].mxu0
    %v174 = vpop.f32.mrb[0].mxu0
    %v175 = vadd.f32 0.0, %v174
    %v176 = vpop.f32.mrb[0].mxu0
    %177 = vmatprep.mubr.bf16.mxu0 0
    %178 = vmatmul.mubr.bf16.gmra.mrb[0].mxu0 %v107
    %v179 = vpop.f32.mrb[0].mxu0
    %v180 = vadd.f32 0.0, %v179
    %v181 = vpop.f32.mrb[0].mxu0
    %v182 = vpop.f32.mrb[0].mxu0
    %v183 = vadd.f32 0.0, %v182
    %v184 = vpop.f32.mrb[0].mxu0
    %185 = vmatprep.mubr.bf16.mxu0 0
    %186 = vmatmul.mubr.bf16.gmra.mrb[0].mxu0 %v110
    %v187 = vpop.f32.mrb[0].mxu0
    %v188 = vadd.f32 0.0, %v187
    %v189 = vpop.f32.mrb[0].mxu0
    %v190 = vpop.f32.mrb[0].mxu0
    %v191 = vadd.f32 0.0, %v190
    %v192 = vpop.f32.mrb[0].mxu0
    %193 = vmatprep.mubr.bf16.mxu0 0
    %194 = vmatmul.mubr.bf16.gmra.mrb[0].mxu0 %v113
    %v195 = vpop.f32.mrb[0].mxu0
    %v196 = vadd.f32 0.0, %v195
    %v197 = vpop.f32.mrb[0].mxu0
    %v198 = vpop.f32.mrb[0].mxu0
    %v199 = vadd.f32 0.0, %v198
    %v200 = vpop.f32.mrb[0].mxu0
    %201 = vmatprep.mubr.bf16.mxu0 0
    %202 = vmatmul.mubr.bf16.gmra.mrb[0].mxu0 %v116
    %v203 = vpop.f32.mrb[0].mxu0
    %v204 = vadd.f32 0.0, %v203
    %v205 = vpop.f32.mrb[0].mxu0
    %v206 = vpop.f32.mrb[0].mxu0
    %v207 = vadd.f32 0.0, %v206
    %v208 = vpop.f32.mrb[0].mxu0
    %209 = vmatprep.mubr.bf16.mxu0 0
    %210 = vmatmul.mubr.bf16.gmra.mrb[0].mxu0 %v119
    %v211 = vpop.f32.mrb[0].mxu0
    %v212 = vadd.f32 0.0, %v211
    %v213 = vpop.f32.mrb[0].mxu0
    %v214 = vpop.f32.mrb[0].mxu0
    %v215 = vadd.f32 0.0, %v214
    %v216 = vpop.f32.mrb[0].mxu0
    %217 = vdwg.mxu0
    %v218 = vld [vmem:[%s2] sm:$0xf]
    %v219 = vld [vmem:[%s2 + $0x4] sm:$0xf]
    %v220 = vld [vmem:[%s2 + $0x8] sm:$0xf]
    %v221 = vld [vmem:[%s2 + $0xc] sm:$0xf]
    %v222 = vld [vmem:[%s2 + $0x10] sm:$0xf]
    %v223 = vld [vmem:[%s2 + $0x14] sm:$0xf]
    %v224 = vld [vmem:[%s2 + $0x18] sm:$0xf]
    %v225 = vld [vmem:[%s2 + $0x1c] sm:$0xf]
    %v226 = vld [vmem:[%s2 + $0x20] sm:$0xf]
    %v227 = vld [vmem:[%s2 + $0x24] sm:$0xf]
    %v228 = vld [vmem:[%s2 + $0x28] sm:$0xf]
    %v229 = vld [vmem:[%s2 + $0x2c] sm:$0xf]
    %v230 = vld [vmem:[%s2 + $0x30] sm:$0xf]
    %v231 = vld [vmem:[%s2 + $0x34] sm:$0xf]
    %v232 = vld [vmem:[%s2 + $0x38] sm:$0xf]
    %v233 = vld [vmem:[%s2 + $0x3c] sm:$0xf]
    %v234 = vunpack.c.l.bf16 %v218
    %v235 = vunpack.c.l.bf16 %v219
    %v236 = vunpack.c.l.bf16 %v220
    %v237 = vunpack.c.l.bf16 %v221
    %v238 = vunpack.c.l.bf16 %v222
    %v239 = vunpack.c.l.bf16 %v223
    %v240 = vunpack.c.l.bf16 %v224
    %v241 = vunpack.c.l.bf16 %v225
    %v242 = vunpack.c.l.bf16 %v226
    %v243 = vunpack.c.l.bf16 %v227
    %v244 = vunpack.c.l.bf16 %v228
    %v245 = vunpack.c.l.bf16 %v229
    %v246 = vunpack.c.l.bf16 %v230
    %v247 = vunpack.c.l.bf16 %v231
    %v248 = vunpack.c.l.bf16 %v232
    %v249 = vunpack.c.l.bf16 %v233
    %v250 = vmul.f32 %v234, %v156
    %v251 = vmul.f32 %v235, %v159
    %v252 = vmul.f32 %v236, %v164
    %v253 = vmul.f32 %v237, %v167
    %v254 = vmul.f32 %v238, %v172
    %v255 = vmul.f32 %v239, %v175
    %v256 = vmul.f32 %v240, %v180
    %v257 = vmul.f32 %v241, %v183
    %v258 = vmul.f32 %v242, %v188
    %v259 = vmul.f32 %v243, %v191
    %v260 = vmul.f32 %v244, %v196
    %v261 = vmul.f32 %v245, %v199
    %v262 = vmul.f32 %v246, %v204
    %v263 = vmul.f32 %v247, %v207
    %v264 = vmul.f32 %v248, %v212
    %v265 = vmul.f32 %v249, %v215
    %v266 = vstv %s23
    %v268 = vsel %vm96, 1.0, 0
    %v271 = vsel %vm96, %v250, 0
    %v274 = vsel %vm96, %v251, 0
    %v277 = vsel %vm96, %v252, 0
    %v280 = vsel %vm96, %v253, 0
    %v283 = vsel %vm96, %v254, 0
    %v286 = vsel %vm96, %v255, 0
    %v289 = vsel %vm96, %v256, 0
    %v292 = vsel %vm96, %v257, 0
    %v295 = vsel %vm96, %v258, 0
    %v298 = vsel %vm96, %v259, 0
    %v301 = vsel %vm96, %v260, 0
    %v304 = vsel %vm96, %v261, 0
    %v307 = vsel %vm96, %v262, 0
    %v310 = vsel %vm96, %v263, 0
    %v313 = vsel %vm96, %v264, 0
    %v316 = vsel %vm96, %v265, 0
    %318 = vmatprep.subr.mxu0 0.0
    %319 = vmatpush1.xpose.msra.mxu0 %v271
    %320 = vmatprep.subr.mxu0 0.0
    %321 = vmatpush1.xpose.msra.mxu0 %v274
    %322 = vmatprep.subr.mxu0 0.0
    %323 = vmatpush1.xpose.msra.mxu0 %v277
    %324 = vmatprep.subr.mxu0 0.0
    %325 = vmatpush1.xpose.msra.mxu0 %v280
    %326 = vmatprep.subr.mxu0 0.0
    %327 = vmatpush1.xpose.msra.mxu0 %v283
    %328 = vmatprep.subr.mxu0 0.0
    %329 = vmatpush1.xpose.msra.mxu0 %v286
    %330 = vmatprep.subr.mxu0 0.0
    %331 = vmatpush1.xpose.msra.mxu0 %v289
    %332 = vmatprep.subr.mxu0 0.0
    %333 = vmatpush1.xpose.msra.mxu0 %v292
    %334 = vmatprep.subr.mxu0 0.0
    %335 = vmatpush1.xpose.msra.mxu0 %v295
    %336 = vmatprep.subr.mxu0 0.0
    %337 = vmatpush1.xpose.msra.mxu0 %v298
    %338 = vmatprep.subr.mxu0 0.0
    %339 = vmatpush1.xpose.msra.mxu0 %v301
    %340 = vmatprep.subr.mxu0 0.0
    %341 = vmatpush1.xpose.msra.mxu0 %v304
    %342 = vmatprep.subr.mxu0 0.0
    %343 = vmatpush1.xpose.msra.mxu0 %v307
    %344 = vmatprep.subr.mxu0 0.0
    %345 = vmatpush1.xpose.msra.mxu0 %v310
    %346 = vmatprep.subr.mxu0 0.0
    %347 = vmatpush1.xpose.msra.mxu0 %v313
    %348 = vmatprep.subr.mxu0 0.0
    %349 = vmatpush1.xpose.msra.mxu0 %v316
    %350 = vmatprep.subr.mxu0 0.0
    %351 = vmatpush1.xpose.msra.mxu0 0.0
    %352 = vmatprep.subr.mxu0 0.0
    %353 = vmatpush1.xpose.msra.mxu0 0.0
    %354 = vmatprep.subr.mxu0 0.0
    %355 = vmatpush1.xpose.msra.mxu0 0.0
    %356 = vmatprep.subr.mxu0 0.0
    %357 = vmatpush1.xpose.msra.mxu0 0.0
    %358 = vmatprep.subr.mxu0 0.0
    %359 = vmatpush1.xpose.msra.mxu0 0.0
    %360 = vmatprep.subr.mxu0 0.0
    %361 = vmatpush1.xpose.msra.mxu0 0.0
    %362 = vmatprep.subr.mxu0 0.0
    %363 = vmatpush1.xpose.msra.mxu0 0.0
    %364 = vmatprep.subr.mxu0 0.0
    %365 = vmatpush1.xpose.msra.mxu0 0.0
    %366 = vmatprep.subr.mxu0 0.0
    %367 = vmatpush1.xpose.msra.mxu0 0.0
    %368 = vmatprep.subr.mxu0 0.0
    %369 = vmatpush1.xpose.msra.mxu0 0.0
    %370 = vmatprep.subr.mxu0 0.0
    %371 = vmatpush1.xpose.msra.mxu0 0.0
    %372 = vmatprep.subr.mxu0 0.0
    %373 = vmatpush1.xpose.msra.mxu0 0.0
    %374 = vmatprep.subr.mxu0 0.0
    %375 = vmatpush1.xpose.msra.mxu0 0.0
    %376 = vmatprep.subr.mxu0 0.0
    %377 = vmatpush1.xpose.msra.mxu0 0.0
    %378 = vmatprep.subr.mxu0 0.0
    %379 = vmatpush1.xpose.msra.mxu0 0.0
    %380 = vmatprep.subr.mxu0 0.0
    %381 = vmatpush1.xpose.msra.mxu0 0.0
    %382 = vmatprep.mubr.f32.mxu0 0.0
    %383 = vmatmul.mubr.f32.gmra.mrb[0].mxu0 %v268
    %v384 = vpop.f32.mrb[0].mxu0
    %v385 = vadd.f32 %v266, %v384
    %v386 = vpop.f32.mrb[0].mxu0
    %387 = vdwg.mxu0
    %v388 = vxor.u32 %v385, 2147483648
    %v389 = vmul.f32 %v388, 1.442695
    %v390 = vpow.pop %v389
    %v391 = vadd.f32 %v390, 1.0
    %v392 = vrcp.pop %v391
    %v393 = vmul.f32 1.0, %v392
    %394 = vst [vmem:[#allocation3] sm:$0x1] %v393
    %v395 = vld [vmem:[%s3] sm:$0xf]
    %v396 = vld [vmem:[%s3 + $0x4] sm:$0xf]
    %v397 = vld [vmem:[%s3 + $0x8] sm:$0xf]
    %v398 = vld [vmem:[%s3 + $0xc] sm:$0xf]
    %v399 = vld [vmem:[%s3 + $0x10] sm:$0xf]
    %v400 = vld [vmem:[%s3 + $0x14] sm:$0xf]
    %v401 = vld [vmem:[%s3 + $0x18] sm:$0xf]
    %v402 = vld [vmem:[%s3 + $0x1c] sm:$0xf]
    %v403 = vld [vmem:[%s3 + $0x20] sm:$0xf]
    %v404 = vld [vmem:[%s3 + $0x24] sm:$0xf]
    %v405 = vld [vmem:[%s3 + $0x28] sm:$0xf]
    %v406 = vld [vmem:[%s3 + $0x2c] sm:$0xf]
    %v407 = vld [vmem:[%s3 + $0x30] sm:$0xf]
    %v408 = vld [vmem:[%s3 + $0x34] sm:$0xf]
    %v409 = vld [vmem:[%s3 + $0x38] sm:$0xf]
    %v410 = vld [vmem:[%s3 + $0x3c] sm:$0xf]
    %v411 = vunpack.c.l.bf16 %v395
    %v412 = vunpack.c.l.bf16 %v396
    %v413 = vunpack.c.l.bf16 %v397
    %v414 = vunpack.c.l.bf16 %v398
    %v415 = vunpack.c.l.bf16 %v399
    %v416 = vunpack.c.l.bf16 %v400
    %v417 = vunpack.c.l.bf16 %v401
    %v418 = vunpack.c.l.bf16 %v402
    %v419 = vunpack.c.l.bf16 %v403
    %v420 = vunpack.c.l.bf16 %v404
    %v421 = vunpack.c.l.bf16 %v405
    %v422 = vunpack.c.l.bf16 %v406
    %v423 = vunpack.c.l.bf16 %v407
    %v424 = vunpack.c.l.bf16 %v408
    %v425 = vunpack.c.l.bf16 %v409
    %v426 = vunpack.c.l.bf16 %v410
    %v427 = vmul.f32 %v411, %v156
    %v428 = vmul.f32 %v412, %v159
    %v429 = vmul.f32 %v413, %v164
    %v430 = vmul.f32 %v414, %v167
    %v431 = vmul.f32 %v415, %v172
    %v432 = vmul.f32 %v416, %v175
    %v433 = vmul.f32 %v417, %v180
    %v434 = vmul.f32 %v418, %v183
    %v435 = vmul.f32 %v419, %v188
    %v436 = vmul.f32 %v420, %v191
    %v437 = vmul.f32 %v421, %v196
    %v438 = vmul.f32 %v422, %v199
    %v439 = vmul.f32 %v423, %v204
    %v440 = vmul.f32 %v424, %v207
    %v441 = vmul.f32 %v425, %v212
    %v442 = vmul.f32 %v426, %v215
    %v444 = vsel %vm96, %v427, 0
    %v447 = vsel %vm96, %v428, 0
    %v450 = vsel %vm96, %v429, 0
    %v453 = vsel %vm96, %v430, 0
    %v456 = vsel %vm96, %v431, 0
    %v459 = vsel %vm96, %v432, 0
    %v462 = vsel %vm96, %v433, 0
    %v465 = vsel %vm96, %v434, 0
    %v468 = vsel %vm96, %v435, 0
    %v471 = vsel %vm96, %v436, 0
    %v474 = vsel %vm96, %v437, 0
    %v477 = vsel %vm96, %v438, 0
    %v480 = vsel %vm96, %v439, 0
    %v483 = vsel %vm96, %v440, 0
    %v486 = vsel %vm96, %v441, 0
    %v489 = vsel %vm96, %v442, 0
    %491 = vmatprep.subr.mxu0 0.0
    %492 = vmatpush1.xpose.msra.mxu0 %v444
    %493 = vmatprep.subr.mxu0 0.0
    %494 = vmatpush1.xpose.msra.mxu0 %v447
    %495 = vmatprep.subr.mxu0 0.0
    %496 = vmatpush1.xpose.msra.mxu0 %v450
    %497 = vmatprep.subr.mxu0 0.0
    %498 = vmatpush1.xpose.msra.mxu0 %v453
    %499 = vmatprep.subr.mxu0 0.0
    %500 = vmatpush1.xpose.msra.mxu0 %v456
    %501 = vmatprep.subr.mxu0 0.0
    %502 = vmatpush1.xpose.msra.mxu0 %v459
    %503 = vmatprep.subr.mxu0 0.0
    %504 = vmatpush1.xpose.msra.mxu0 %v462
    %505 = vmatprep.subr.mxu0 0.0
    %506 = vmatpush1.xpose.msra.mxu0 %v465
    %507 = vmatprep.subr.mxu0 0.0
    %508 = vmatpush1.xpose.msra.mxu0 %v468
    %509 = vmatprep.subr.mxu0 0.0
    %510 = vmatpush1.xpose.msra.mxu0 %v471
    %511 = vmatprep.subr.mxu0 0.0
    %512 = vmatpush1.xpose.msra.mxu0 %v474
    %513 = vmatprep.subr.mxu0 0.0
    %514 = vmatpush1.xpose.msra.mxu0 %v477
    %515 = vmatprep.subr.mxu0 0.0
    %516 = vmatpush1.xpose.msra.mxu0 %v480
    %517 = vmatprep.subr.mxu0 0.0
    %518 = vmatpush1.xpose.msra.mxu0 %v483
    %519 = vmatprep.subr.mxu0 0.0
    %520 = vmatpush1.xpose.msra.mxu0 %v486
    %521 = vmatprep.subr.mxu0 0.0
    %522 = vmatpush1.xpose.msra.mxu0 %v489
    %523 = vmatprep.subr.mxu0 0.0
    %524 = vmatpush1.xpose.msra.mxu0 0.0
    %525 = vmatprep.subr.mxu0 0.0
    %526 = vmatpush1.xpose.msra.mxu0 0.0
    %527 = vmatprep.subr.mxu0 0.0
    %528 = vmatpush1.xpose.msra.mxu0 0.0
    %529 = vmatprep.subr.mxu0 0.0
    %530 = vmatpush1.xpose.msra.mxu0 0.0
    %531 = vmatprep.subr.mxu0 0.0
    %532 = vmatpush1.xpose.msra.mxu0 0.0
    %533 = vmatprep.subr.mxu0 0.0
    %534 = vmatpush1.xpose.msra.mxu0 0.0
    %535 = vmatprep.subr.mxu0 0.0
    %536 = vmatpush1.xpose.msra.mxu0 0.0
    %537 = vmatprep.subr.mxu0 0.0
    %538 = vmatpush1.xpose.msra.mxu0 0.0
    %539 = vmatprep.subr.mxu0 0.0
    %540 = vmatpush1.xpose.msra.mxu0 0.0
    %541 = vmatprep.subr.mxu0 0.0
    %542 = vmatpush1.xpose.msra.mxu0 0.0
    %543 = vmatprep.subr.mxu0 0.0
    %544 = vmatpush1.xpose.msra.mxu0 0.0
    %545 = vmatprep.subr.mxu0 0.0
    %546 = vmatpush1.xpose.msra.mxu0 0.0
    %547 = vmatprep.subr.mxu0 0.0
    %548 = vmatpush1.xpose.msra.mxu0 0.0
    %549 = vmatprep.subr.mxu0 0.0
    %550 = vmatpush1.xpose.msra.mxu0 0.0
    %551 = vmatprep.subr.mxu0 0.0
    %552 = vmatpush1.xpose.msra.mxu0 0.0
    %553 = vmatprep.subr.mxu0 0.0
    %554 = vmatpush1.xpose.msra.mxu0 0.0
    %555 = vmatprep.mubr.f32.mxu0 0.0
    %556 = vmatmul.mubr.f32.gmra.mrb[0].mxu0 %v268
    %v557 = vpop.f32.mrb[0].mxu0
    %v558 = vadd.f32 %v266, %v557
    %v559 = vpop.f32.mrb[0].mxu0
    %560 = vdwg.mxu0
    %v561 = vxor.u32 %v558, 2147483648
    %v562 = vmul.f32 %v561, 1.442695
    %v563 = vpow.pop %v562
    %v564 = vadd.f32 %v563, 1.0
    %v565 = vrcp.pop %v564
    %v566 = vmul.f32 1.0, %v565
    %567 = vst [vmem:[#allocation3 + $0x1] sm:$0x1] %v566
    // Predicated region
    $region22: #{tpu_custom_call.1} parent=1 // pred_check
      _
    $region23: #{tpu_custom_call.1} parent=1 // pred_check_branch
      %569 = sbr.rel (0) target = $region25
    $region24: #{tpu_custom_call.1} parent=1 // pred_region
      %s571 = ssub.s32 32, 32
      %572 = vsyncadd [#allocation4], %s571
      %s574 = sshll.u32 [#allocation3], 4
      %s575 = int_to_ptr.vmem [resolvable:$true] %s574
      %577 = dma.vmem_to_hbm [thread:$0]  %s575, 32, %s5, [#allocation4]
    $region25: #{tpu_custom_call.1} parent=1 // pred_fallthru
      _
    // Predicated region
    $region26: #{tpu_custom_call.1} parent=1 // pred_check
      _
    $region27: #{tpu_custom_call.1} parent=1 // pred_check_branch
      %579 = sbr.rel (0) target = $region29
    $region28: #{tpu_custom_call.1} parent=1 // pred_region
      %580 = dma.done [#allocation4], 32
    $region29: #{tpu_custom_call.1} parent=1 // pred_fallthru
      _
    %581 = vsyncpa [#allocation4], 1

// kernel: tpu_custom_call.1
$region0: #{tpu_custom_call.1}
  #allocation0 [shape = 'u32[]', space=smem, size = 0x4, offset = 0x4, fixed_abs, tag = 'smem constant byte address 0x4 - core index']
  #allocation1 [shape = 'u32[144,128]{1,0:T(1,128)}', space=vmem, size = 0x12000, scoped, tag = 'internal scratch']
  #allocation2 [shape = 'f32[1]{0:T(128)S(6)}', space=smem, size = 0x200, scoped, tag = 'scoped memory for tpu_custom_call.1']
  %s0 = inlined_call_operand.<no memory space> [shape: f32[1], index: 0, kind: input, shape index: {}]
  %s1 = inlined_call_operand.vmem [shape: bf16[128,32], index: 1, kind: input, shape index: {}]
  %s2 = inlined_call_operand.vmem [shape: bf16[128,32], index: 2, kind: input, shape index: {}]
  %s3 = inlined_call_operand.vmem [shape: bf16[128,32], index: 3, kind: input, shape index: {}]
  %s4 = inlined_call_operand.vmem [shape: bf16[32,32], index: 4, kind: input, shape index: {}]
  %s5 = inlined_call_operand.vmem [shape: f32[128,2], index: 5, kind: output, shape index: {}]
  %s6 = sld [smem:[#allocation0]]
  $region30: #{tpu_custom_call.1} parent=0
    _
  %s8 = ssub.s32 1, %s6
  %s9 = scalar_select 0, %s8, %s6
  %10 = sst [smem:[#allocation2]] %s0
  // Predicated region
  $region2: #{tpu_custom_call.1} parent=0 // pred_check
    _
  $region3: #{tpu_custom_call.1} parent=0 // pred_check_branch
    %12 = sbr.rel (0) target = $region5
  $region4: #{tpu_custom_call.1} parent=0 // pred_region
    _
  $region5: #{tpu_custom_call.1} parent=0 // pred_fallthru
    _
  // Predicated region
  $region6: #{tpu_custom_call.1} parent=0 // pred_check
    _
  $region7: #{tpu_custom_call.1} parent=0 // pred_check_branch
    %14 = sbr.rel (0) target = $region9
  $region8: #{tpu_custom_call.1} parent=0 // pred_region
    _
  $region9: #{tpu_custom_call.1} parent=0 // pred_fallthru
    _
  // Predicated region
  $region10: #{tpu_custom_call.1} parent=0 // pred_check
    _
  $region11: #{tpu_custom_call.1} parent=0 // pred_check_branch
    %16 = sbr.rel (0) target = $region13
  $region12: #{tpu_custom_call.1} parent=0 // pred_region
    _
  $region13: #{tpu_custom_call.1} parent=0 // pred_fallthru
    _
  // Predicated region
  $region14: #{tpu_custom_call.1} parent=0 // pred_check
    _
  $region15: #{tpu_custom_call.1} parent=0 // pred_check_branch
    %18 = sbr.rel (0) target = $region17
  $region16: #{tpu_custom_call.1} parent=0 // pred_region
    _
  $region17: #{tpu_custom_call.1} parent=0 // pred_fallthru
    _
  // Predicated region
  $region18: #{tpu_custom_call.1} parent=0 // pred_check
    _
  $region19: #{tpu_custom_call.1} parent=0 // pred_check_branch
    %20 = sbr.rel (0) target = $region21
  $region20: #{tpu_custom_call.1} parent=0 // pred_region
    _
  $region21: #{tpu_custom_call.1} parent=0 // pred_fallthru
    _
  %s22 = sld [smem:[#allocation2]]
  %v23 = vld [vmem:[%s1] sm:$0xf]
  %v24 = vld [vmem:[%s1 + $0x4] sm:$0xf]
  %v25 = vld [vmem:[%s1 + $0x8] sm:$0xf]
  %v26 = vld [vmem:[%s1 + $0xc] sm:$0xf]
  %v27 = vld [vmem:[%s1 + $0x10] sm:$0xf]
  %v28 = vld [vmem:[%s1 + $0x14] sm:$0xf]
  %v29 = vld [vmem:[%s1 + $0x18] sm:$0xf]
  %v30 = vld [vmem:[%s1 + $0x1c] sm:$0xf]
  %v31 = vld [vmem:[%s1 + $0x20] sm:$0xf]
  %v32 = vld [vmem:[%s1 + $0x24] sm:$0xf]
  %v33 = vld [vmem:[%s1 + $0x28] sm:$0xf]
  %v34 = vld [vmem:[%s1 + $0x2c] sm:$0xf]
  %v35 = vld [vmem:[%s1 + $0x30] sm:$0xf]
  %v36 = vld [vmem:[%s1 + $0x34] sm:$0xf]
  %v37 = vld [vmem:[%s1 + $0x38] sm:$0xf]
  %v38 = vld [vmem:[%s1 + $0x3c] sm:$0xf]
  %v39 = vld [vmem:[%s4] sm:$0xf]
  %v40 = vld [vmem:[%s4 + $0x4] sm:$0xf]
  %v41 = vld [vmem:[%s4 + $0x8] sm:$0xf]
  %v42 = vld [vmem:[%s4 + $0xc] sm:$0xf]
  %v59 = vunpack.c.l.b16 %v23
  %v60 = vunpack.c.l.b16 %v24
  %v61 = vunpack.c.l.b16 %v25
  %v62 = vunpack.c.l.b16 %v26
  %v63 = vunpack.c.l.b16 %v27
  %v64 = vunpack.c.l.b16 %v28
  %v65 = vunpack.c.l.b16 %v29
  %v66 = vunpack.c.l.b16 %v30
  %v67 = vunpack.c.l.b16 %v31
  %v68 = vunpack.c.l.b16 %v32
  %v69 = vunpack.c.l.b16 %v33
  %v70 = vunpack.c.l.b16 %v34
  %v71 = vunpack.c.l.b16 %v35
  %v72 = vunpack.c.l.b16 %v36
  %v73 = vunpack.c.l.b16 %v37
  %v74 = vunpack.c.l.b16 %v38
  %v75 = vpack.c.b16 %v60, %v59
  %v76 = vpack.c.b16 %v62, %v61
  %v77 = vpack.c.b16 %v64, %v63
  %v78 = vpack.c.b16 %v66, %v65
  %v79 = vpack.c.b16 %v68, %v67
  %v80 = vpack.c.b16 %v70, %v69
  %v81 = vpack.c.b16 %v72, %v71
  %v82 = vpack.c.b16 %v74, %v73
  %v87 = vunpack.c.l.b16 %v39
  %v88 = vunpack.c.l.b16 %v40
  %v89 = vunpack.c.l.b16 %v41
  %v90 = vunpack.c.l.b16 %v42
  %v91 = vpack.c.b16 %v88, %v87
  %v92 = vpack.c.b16 %v90, %v89
  %vm95 = vcmask 261120
  %v97 = vsel %vm95, %v75, 0
  %v100 = vsel %vm95, %v76, 0
  %v103 = vsel %vm95, %v77, 0
  %v106 = vsel %vm95, %v78, 0
  %v109 = vsel %vm95, %v79, 0
  %v112 = vsel %vm95, %v80, 0
  %v115 = vsel %vm95, %v81, 0
  %v118 = vsel %vm95, %v82, 0
  %120 = vmatprep.subr.bf16.mxu0 0
  %121 = vmatpush1.bf16.msra.mxu0 %v91
  %122 = vmatprep.subr.bf16.mxu0 0
  %123 = vmatpush1.bf16.msra.mxu0 %v92
  %124 = vmatprep.subr.bf16.mxu0 0
  %125 = vmatpush1.bf16.msra.mxu0 0
  %126 = vmatprep.subr.bf16.mxu0 0
  %127 = vmatpush1.bf16.msra.mxu0 0
  %128 = vmatprep.subr.bf16.mxu0 0
  %129 = vmatpush1.bf16.msra.mxu0 0
  %130 = vmatprep.subr.bf16.mxu0 0
  %131 = vmatpush1.bf16.msra.mxu0 0
  %132 = vmatprep.subr.bf16.mxu0 0
  %133 = vmatpush1.bf16.msra.mxu0 0
  %134 = vmatprep.subr.bf16.mxu0 0
  %135 = vmatpush1.bf16.msra.mxu0 0
  %136 = vmatprep.subr.bf16.mxu0 0
  %137 = vmatpush1.bf16.msra.mxu0 0
  %138 = vmatprep.subr.bf16.mxu0 0
  %139 = vmatpush1.bf16.msra.mxu0 0
  %140 = vmatprep.subr.bf16.mxu0 0
  %141 = vmatpush1.bf16.msra.mxu0 0
  %142 = vmatprep.subr.bf16.mxu0 0
  %143 = vmatpush1.bf16.msra.mxu0 0
  %144 = vmatprep.subr.bf16.mxu0 0
  %145 = vmatpush1.bf16.msra.mxu0 0
  %146 = vmatprep.subr.bf16.mxu0 0
  %147 = vmatpush1.bf16.msra.mxu0 0
  %148 = vmatprep.subr.bf16.mxu0 0
  %149 = vmatpush1.bf16.msra.mxu0 0
  %150 = vmatprep.subr.bf16.mxu0 0
  %151 = vmatpush1.bf16.msra.mxu0 0
  %152 = vmatprep.mubr.bf16.mxu0 0
  %153 = vmatmul.mubr.bf16.gmra.mrb[0].mxu0 %v97
  %v154 = vpop.f32.mrb[0].mxu0
  %v155 = vadd.f32 0.0, %v154
  %v156 = vpop.f32.mrb[0].mxu0
  %v157 = vpop.f32.mrb[0].mxu0
  %v158 = vadd.f32 0.0, %v157
  %v159 = vpop.f32.mrb[0].mxu0
  %160 = vmatprep.mubr.bf16.mxu0 0
  %161 = vmatmul.mubr.bf16.gmra.mrb[0].mxu0 %v100
  %v162 = vpop.f32.mrb[0].mxu0
  %v163 = vadd.f32 0.0, %v162
  %v164 = vpop.f32.mrb[0].mxu0
  %v165 = vpop.f32.mrb[0].mxu0
  %v166 = vadd.f32 0.0, %v165
  %v167 = vpop.f32.mrb[0].mxu0
  %168 = vmatprep.mubr.bf16.mxu0 0
  %169 = vmatmul.mubr.bf16.gmra.mrb[0].mxu0 %v103
  %v170 = vpop.f32.mrb[0].mxu0
  %v171 = vadd.f32 0.0, %v170
  %v172 = vpop.f32.mrb[0].mxu0
  %v173 = vpop.f32.mrb[0].mxu0
  %v174 = vadd.f32 0.0, %v173
  %v175 = vpop.f32.mrb[0].mxu0
  %176 = vmatprep.mubr.bf16.mxu0 0
  %177 = vmatmul.mubr.bf16.gmra.mrb[0].mxu0 %v106
  %v178 = vpop.f32.mrb[0].mxu0
  %v179 = vadd.f32 0.0, %v178
  %v180 = vpop.f32.mrb[0].mxu0
  %v181 = vpop.f32.mrb[0].mxu0
  %v182 = vadd.f32 0.0, %v181
  %v183 = vpop.f32.mrb[0].mxu0
  %184 = vmatprep.mubr.bf16.mxu0 0
  %185 = vmatmul.mubr.bf16.gmra.mrb[0].mxu0 %v109
  %v186 = vpop.f32.mrb[0].mxu0
  %v187 = vadd.f32 0.0, %v186
  %v188 = vpop.f32.mrb[0].mxu0
  %v189 = vpop.f32.mrb[0].mxu0
  %v190 = vadd.f32 0.0, %v189
  %v191 = vpop.f32.mrb[0].mxu0
  %192 = vmatprep.mubr.bf16.mxu0 0
  %193 = vmatmul.mubr.bf16.gmra.mrb[0].mxu0 %v112
  %v194 = vpop.f32.mrb[0].mxu0
  %v195 = vadd.f32 0.0, %v194
  %v196 = vpop.f32.mrb[0].mxu0
  %v197 = vpop.f32.mrb[0].mxu0
  %v198 = vadd.f32 0.0, %v197
  %v199 = vpop.f32.mrb[0].mxu0
  %200 = vmatprep.mubr.bf16.mxu0 0
  %201 = vmatmul.mubr.bf16.gmra.mrb[0].mxu0 %v115
  %v202 = vpop.f32.mrb[0].mxu0
  %v203 = vadd.f32 0.0, %v202
  %v204 = vpop.f32.mrb[0].mxu0
  %v205 = vpop.f32.mrb[0].mxu0
  %v206 = vadd.f32 0.0, %v205
  %v207 = vpop.f32.mrb[0].mxu0
  %208 = vmatprep.mubr.bf16.mxu0 0
  %209 = vmatmul.mubr.bf16.gmra.mrb[0].mxu0 %v118
  %v210 = vpop.f32.mrb[0].mxu0
  %v211 = vadd.f32 0.0, %v210
  %v212 = vpop.f32.mrb[0].mxu0
  %v213 = vpop.f32.mrb[0].mxu0
  %v214 = vadd.f32 0.0, %v213
  %v215 = vpop.f32.mrb[0].mxu0
  %216 = vdwg.mxu0
  %v217 = vld [vmem:[%s2] sm:$0xf]
  %v218 = vld [vmem:[%s2 + $0x4] sm:$0xf]
  %v219 = vld [vmem:[%s2 + $0x8] sm:$0xf]
  %v220 = vld [vmem:[%s2 + $0xc] sm:$0xf]
  %v221 = vld [vmem:[%s2 + $0x10] sm:$0xf]
  %v222 = vld [vmem:[%s2 + $0x14] sm:$0xf]
  %v223 = vld [vmem:[%s2 + $0x18] sm:$0xf]
  %v224 = vld [vmem:[%s2 + $0x1c] sm:$0xf]
  %v225 = vld [vmem:[%s2 + $0x20] sm:$0xf]
  %v226 = vld [vmem:[%s2 + $0x24] sm:$0xf]
  %v227 = vld [vmem:[%s2 + $0x28] sm:$0xf]
  %v228 = vld [vmem:[%s2 + $0x2c] sm:$0xf]
  %v229 = vld [vmem:[%s2 + $0x30] sm:$0xf]
  %v230 = vld [vmem:[%s2 + $0x34] sm:$0xf]
  %v231 = vld [vmem:[%s2 + $0x38] sm:$0xf]
  %v232 = vld [vmem:[%s2 + $0x3c] sm:$0xf]
  %v233 = vunpack.c.l.bf16 %v217
  %v234 = vunpack.c.l.bf16 %v218
  %v235 = vunpack.c.l.bf16 %v219
  %v236 = vunpack.c.l.bf16 %v220
  %v237 = vunpack.c.l.bf16 %v221
  %v238 = vunpack.c.l.bf16 %v222
  %v239 = vunpack.c.l.bf16 %v223
  %v240 = vunpack.c.l.bf16 %v224
  %v241 = vunpack.c.l.bf16 %v225
  %v242 = vunpack.c.l.bf16 %v226
  %v243 = vunpack.c.l.bf16 %v227
  %v244 = vunpack.c.l.bf16 %v228
  %v245 = vunpack.c.l.bf16 %v229
  %v246 = vunpack.c.l.bf16 %v230
  %v247 = vunpack.c.l.bf16 %v231
  %v248 = vunpack.c.l.bf16 %v232
  %v249 = vmul.f32 %v233, %v155
  %v250 = vmul.f32 %v234, %v158
  %v251 = vmul.f32 %v235, %v163
  %v252 = vmul.f32 %v236, %v166
  %v253 = vmul.f32 %v237, %v171
  %v254 = vmul.f32 %v238, %v174
  %v255 = vmul.f32 %v239, %v179
  %v256 = vmul.f32 %v240, %v182
  %v257 = vmul.f32 %v241, %v187
  %v258 = vmul.f32 %v242, %v190
  %v259 = vmul.f32 %v243, %v195
  %v260 = vmul.f32 %v244, %v198
  %v261 = vmul.f32 %v245, %v203
  %v262 = vmul.f32 %v246, %v206
  %v263 = vmul.f32 %v247, %v211
  %v264 = vmul.f32 %v248, %v214
  %v265 = vsel %vm95, %v249, 0.0
  %266 = vadd.xlane.f32.xlu0 %v265
  %v267 = vpop.xlane.xlu0 %266
  %v268 = vsel %vm95, %v250, 0.0
  %269 = vadd.xlane.f32.xlu0 %v268
  %v270 = vpop.xlane.xlu0 %269
  %v271 = vsel %vm95, %v251, 0.0
  %272 = vadd.xlane.f32.xlu0 %v271
  %v273 = vpop.xlane.xlu0 %272
  %v274 = vsel %vm95, %v252, 0.0
  %275 = vadd.xlane.f32.xlu0 %v274
  %v276 = vpop.xlane.xlu0 %275
  %v277 = vsel %vm95, %v253, 0.0
  %278 = vadd.xlane.f32.xlu0 %v277
  %v279 = vpop.xlane.xlu0 %278
  %v280 = vsel %vm95, %v254, 0.0
  %281 = vadd.xlane.f32.xlu0 %v280
  %v282 = vpop.xlane.xlu0 %281
  %v283 = vsel %vm95, %v255, 0.0
  %284 = vadd.xlane.f32.xlu0 %v283
  %v285 = vpop.xlane.xlu0 %284
  %v286 = vsel %vm95, %v256, 0.0
  %287 = vadd.xlane.f32.xlu0 %v286
  %v288 = vpop.xlane.xlu0 %287
  %v289 = vsel %vm95, %v257, 0.0
  %290 = vadd.xlane.f32.xlu0 %v289
  %v291 = vpop.xlane.xlu0 %290
  %v292 = vsel %vm95, %v258, 0.0
  %293 = vadd.xlane.f32.xlu0 %v292
  %v294 = vpop.xlane.xlu0 %293
  %v295 = vsel %vm95, %v259, 0.0
  %296 = vadd.xlane.f32.xlu0 %v295
  %v297 = vpop.xlane.xlu0 %296
  %v298 = vsel %vm95, %v260, 0.0
  %299 = vadd.xlane.f32.xlu0 %v298
  %v300 = vpop.xlane.xlu0 %299
  %v301 = vsel %vm95, %v261, 0.0
  %302 = vadd.xlane.f32.xlu0 %v301
  %v303 = vpop.xlane.xlu0 %302
  %v304 = vsel %vm95, %v262, 0.0
  %305 = vadd.xlane.f32.xlu0 %v304
  %v306 = vpop.xlane.xlu0 %305
  %v307 = vsel %vm95, %v263, 0.0
  %308 = vadd.xlane.f32.xlu0 %v307
  %v309 = vpop.xlane.xlu0 %308
  %v310 = vsel %vm95, %v264, 0.0
  %311 = vadd.xlane.f32.xlu0 %v310
  %v312 = vpop.xlane.xlu0 %311
  %v313 = vstv %s22
  %v314 = vadd.f32 %v267, %v313
  %v315 = vadd.f32 %v270, %v313
  %v316 = vadd.f32 %v273, %v313
  %v317 = vadd.f32 %v276, %v313
  %v318 = vadd.f32 %v279, %v313
  %v319 = vadd.f32 %v282, %v313
  %v320 = vadd.f32 %v285, %v313
  %v321 = vadd.f32 %v288, %v313
  %v322 = vadd.f32 %v291, %v313
  %v323 = vadd.f32 %v294, %v313
  %v324 = vadd.f32 %v297, %v313
  %v325 = vadd.f32 %v300, %v313
  %v326 = vadd.f32 %v303, %v313
  %v327 = vadd.f32 %v306, %v313
  %v328 = vadd.f32 %v309, %v313
  %v329 = vadd.f32 %v312, %v313
  %v330 = vxor.u32 %v314, 2147483648
  %v331 = vxor.u32 %v315, 2147483648
  %v332 = vxor.u32 %v316, 2147483648
  %v333 = vxor.u32 %v317, 2147483648
  %v334 = vxor.u32 %v318, 2147483648
  %v335 = vxor.u32 %v319, 2147483648
  %v336 = vxor.u32 %v320, 2147483648
  %v337 = vxor.u32 %v321, 2147483648
  %v338 = vxor.u32 %v322, 2147483648
  %v339 = vxor.u32 %v323, 2147483648
  %v340 = vxor.u32 %v324, 2147483648
  %v341 = vxor.u32 %v325, 2147483648
  %v342 = vxor.u32 %v326, 2147483648
  %v343 = vxor.u32 %v327, 2147483648
  %v344 = vxor.u32 %v328, 2147483648
  %v345 = vxor.u32 %v329, 2147483648
  %v346 = vmul.f32 %v330, 1.442695
  %v347 = vpow.pop %v346
  %v348 = vmul.f32 %v331, 1.442695
  %v349 = vpow.pop %v348
  %v350 = vmul.f32 %v332, 1.442695
  %v351 = vpow.pop %v350
  %v352 = vmul.f32 %v333, 1.442695
  %v353 = vpow.pop %v352
  %v354 = vmul.f32 %v334, 1.442695
  %v355 = vpow.pop %v354
  %v356 = vmul.f32 %v335, 1.442695
  %v357 = vpow.pop %v356
  %v358 = vmul.f32 %v336, 1.442695
  %v359 = vpow.pop %v358
  %v360 = vmul.f32 %v337, 1.442695
  %v361 = vpow.pop %v360
  %v362 = vmul.f32 %v338, 1.442695
  %v363 = vpow.pop %v362
  %v364 = vmul.f32 %v339, 1.442695
  %v365 = vpow.pop %v364
  %v366 = vmul.f32 %v340, 1.442695
  %v367 = vpow.pop %v366
  %v368 = vmul.f32 %v341, 1.442695
  %v369 = vpow.pop %v368
  %v370 = vmul.f32 %v342, 1.442695
  %v371 = vpow.pop %v370
  %v372 = vmul.f32 %v343, 1.442695
  %v373 = vpow.pop %v372
  %v374 = vmul.f32 %v344, 1.442695
  %v375 = vpow.pop %v374
  %v376 = vmul.f32 %v345, 1.442695
  %v377 = vpow.pop %v376
  %v378 = vadd.f32 %v347, 1.0
  %v379 = vadd.f32 %v349, 1.0
  %v380 = vadd.f32 %v351, 1.0
  %v381 = vadd.f32 %v353, 1.0
  %v382 = vadd.f32 %v355, 1.0
  %v383 = vadd.f32 %v357, 1.0
  %v384 = vadd.f32 %v359, 1.0
  %v385 = vadd.f32 %v361, 1.0
  %v386 = vadd.f32 %v363, 1.0
  %v387 = vadd.f32 %v365, 1.0
  %v388 = vadd.f32 %v367, 1.0
  %v389 = vadd.f32 %v369, 1.0
  %v390 = vadd.f32 %v371, 1.0
  %v391 = vadd.f32 %v373, 1.0
  %v392 = vadd.f32 %v375, 1.0
  %v393 = vadd.f32 %v377, 1.0
  %v394 = vrcp.pop %v378
  %v395 = vmul.f32 1.0, %v394
  %v396 = vrcp.pop %v379
  %v397 = vmul.f32 1.0, %v396
  %v398 = vrcp.pop %v380
  %v399 = vmul.f32 1.0, %v398
  %v400 = vrcp.pop %v381
  %v401 = vmul.f32 1.0, %v400
  %v402 = vrcp.pop %v382
  %v403 = vmul.f32 1.0, %v402
  %v404 = vrcp.pop %v383
  %v405 = vmul.f32 1.0, %v404
  %v406 = vrcp.pop %v384
  %v407 = vmul.f32 1.0, %v406
  %v408 = vrcp.pop %v385
  %v409 = vmul.f32 1.0, %v408
  %v410 = vrcp.pop %v386
  %v411 = vmul.f32 1.0, %v410
  %v412 = vrcp.pop %v387
  %v413 = vmul.f32 1.0, %v412
  %v414 = vrcp.pop %v388
  %v415 = vmul.f32 1.0, %v414
  %v416 = vrcp.pop %v389
  %v417 = vmul.f32 1.0, %v416
  %v418 = vrcp.pop %v390
  %v419 = vmul.f32 1.0, %v418
  %v420 = vrcp.pop %v391
  %v421 = vmul.f32 1.0, %v420
  %v422 = vrcp.pop %v392
  %v423 = vmul.f32 1.0, %v422
  %v424 = vrcp.pop %v393
  %v425 = vmul.f32 1.0, %v424
  %vm426 = vcmask 7168
  %427 = vst.msk [vmem:[%s5] sm:$0xff] %vm426, %v395
  %428 = vst.msk [vmem:[%s5 + $0x8] sm:$0xff] %vm426, %v397
  %429 = vst.msk [vmem:[%s5 + $0x10] sm:$0xff] %vm426, %v399
  %430 = vst.msk [vmem:[%s5 + $0x18] sm:$0xff] %vm426, %v401
  %431 = vst.msk [vmem:[%s5 + $0x20] sm:$0xff] %vm426, %v403
  %432 = vst.msk [vmem:[%s5 + $0x28] sm:$0xff] %vm426, %v405
  %433 = vst.msk [vmem:[%s5 + $0x30] sm:$0xff] %vm426, %v407
  %434 = vst.msk [vmem:[%s5 + $0x38] sm:$0xff] %vm426, %v409
  %435 = vst.msk [vmem:[%s5 + $0x40] sm:$0xff] %vm426, %v411
  %436 = vst.msk [vmem:[%s5 + $0x48] sm:$0xff] %vm426, %v413
  %437 = vst.msk [vmem:[%s5 + $0x50] sm:$0xff] %vm426, %v415
  %438 = vst.msk [vmem:[%s5 + $0x58] sm:$0xff] %vm426, %v417
  %439 = vst.msk [vmem:[%s5 + $0x60] sm:$0xff] %vm426, %v419
  %440 = vst.msk [vmem:[%s5 + $0x68] sm:$0xff] %vm426, %v421
  %441 = vst.msk [vmem:[%s5 + $0x70] sm:$0xff] %vm426, %v423
  %442 = vst.msk [vmem:[%s5 + $0x78] sm:$0xff] %vm426, %v425
  %v443 = vld [vmem:[%s3] sm:$0xf]
  %v444 = vld [vmem:[%s3 + $0x4] sm:$0xf]
  %v445 = vld [vmem:[%s3 + $0x8] sm:$0xf]
  %v446 = vld [vmem:[%s3 + $0xc] sm:$0xf]
  %v447 = vld [vmem:[%s3 + $0x10] sm:$0xf]
  %v448 = vld [vmem:[%s3 + $0x14] sm:$0xf]
  %v449 = vld [vmem:[%s3 + $0x18] sm:$0xf]
  %v450 = vld [vmem:[%s3 + $0x1c] sm:$0xf]
  %v451 = vld [vmem:[%s3 + $0x20] sm:$0xf]
  %v452 = vld [vmem:[%s3 + $0x24] sm:$0xf]
  %v453 = vld [vmem:[%s3 + $0x28] sm:$0xf]
  %v454 = vld [vmem:[%s3 + $0x2c] sm:$0xf]
  %v455 = vld [vmem:[%s3 + $0x30] sm:$0xf]
  %v456 = vld [vmem:[%s3 + $0x34] sm:$0xf]
  %v457 = vld [vmem:[%s3 + $0x38] sm:$0xf]
  %v458 = vld [vmem:[%s3 + $0x3c] sm:$0xf]
  %v459 = vunpack.c.l.bf16 %v443
  %v460 = vunpack.c.l.bf16 %v444
  %v461 = vunpack.c.l.bf16 %v445
  %v462 = vunpack.c.l.bf16 %v446
  %v463 = vunpack.c.l.bf16 %v447
  %v464 = vunpack.c.l.bf16 %v448
  %v465 = vunpack.c.l.bf16 %v449
  %v466 = vunpack.c.l.bf16 %v450
  %v467 = vunpack.c.l.bf16 %v451
  %v468 = vunpack.c.l.bf16 %v452
  %v469 = vunpack.c.l.bf16 %v453
  %v470 = vunpack.c.l.bf16 %v454
  %v471 = vunpack.c.l.bf16 %v455
  %v472 = vunpack.c.l.bf16 %v456
  %v473 = vunpack.c.l.bf16 %v457
  %v474 = vunpack.c.l.bf16 %v458
  %v475 = vmul.f32 %v459, %v155
  %v476 = vmul.f32 %v460, %v158
  %v477 = vmul.f32 %v461, %v163
  %v478 = vmul.f32 %v462, %v166
  %v479 = vmul.f32 %v463, %v171
  %v480 = vmul.f32 %v464, %v174
  %v481 = vmul.f32 %v465, %v179
  %v482 = vmul.f32 %v466, %v182
  %v483 = vmul.f32 %v467, %v187
  %v484 = vmul.f32 %v468, %v190
  %v485 = vmul.f32 %v469, %v195
  %v486 = vmul.f32 %v470, %v198
  %v487 = vmul.f32 %v471, %v203
  %v488 = vmul.f32 %v472, %v206
  %v489 = vmul.f32 %v473, %v211
  %v490 = vmul.f32 %v474, %v214
  %v491 = vsel %vm95, %v475, 0.0
  %492 = vadd.xlane.f32.xlu0 %v491
  %v493 = vpop.xlane.xlu0 %492
  %v494 = vsel %vm95, %v476, 0.0
  %495 = vadd.xlane.f32.xlu0 %v494
  %v496 = vpop.xlane.xlu0 %495
  %v497 = vsel %vm95, %v477, 0.0
  %498 = vadd.xlane.f32.xlu0 %v497
  %v499 = vpop.xlane.xlu0 %498
  %v500 = vsel %vm95, %v478, 0.0
  %501 = vadd.xlane.f32.xlu0 %v500
  %v502 = vpop.xlane.xlu0 %501
  %v503 = vsel %vm95, %v479, 0.0
  %504 = vadd.xlane.f32.xlu0 %v503
  %v505 = vpop.xlane.xlu0 %504
  %v506 = vsel %vm95, %v480, 0.0
  %507 = vadd.xlane.f32.xlu0 %v506
  %v508 = vpop.xlane.xlu0 %507
  %v509 = vsel %vm95, %v481, 0.0
  %510 = vadd.xlane.f32.xlu0 %v509
  %v511 = vpop.xlane.xlu0 %510
  %v512 = vsel %vm95, %v482, 0.0
  %513 = vadd.xlane.f32.xlu0 %v512
  %v514 = vpop.xlane.xlu0 %513
  %v515 = vsel %vm95, %v483, 0.0
  %516 = vadd.xlane.f32.xlu0 %v515
  %v517 = vpop.xlane.xlu0 %516
  %v518 = vsel %vm95, %v484, 0.0
  %519 = vadd.xlane.f32.xlu0 %v518
  %v520 = vpop.xlane.xlu0 %519
  %v521 = vsel %vm95, %v485, 0.0
  %522 = vadd.xlane.f32.xlu0 %v521
  %v523 = vpop.xlane.xlu0 %522
  %v524 = vsel %vm95, %v486, 0.0
  %525 = vadd.xlane.f32.xlu0 %v524
  %v526 = vpop.xlane.xlu0 %525
  %v527 = vsel %vm95, %v487, 0.0
  %528 = vadd.xlane.f32.xlu0 %v527
  %v529 = vpop.xlane.xlu0 %528
  %v530 = vsel %vm95, %v488, 0.0
  %531 = vadd.xlane.f32.xlu0 %v530
  %v532 = vpop.xlane.xlu0 %531
  %v533 = vsel %vm95, %v489, 0.0
  %534 = vadd.xlane.f32.xlu0 %v533
  %v535 = vpop.xlane.xlu0 %534
  %v536 = vsel %vm95, %v490, 0.0
  %537 = vadd.xlane.f32.xlu0 %v536
  %v538 = vpop.xlane.xlu0 %537
  %v539 = vadd.f32 %v493, %v313
  %v540 = vadd.f32 %v496, %v313
  %v541 = vadd.f32 %v499, %v313
  %v542 = vadd.f32 %v502, %v313
  %v543 = vadd.f32 %v505, %v313
  %v544 = vadd.f32 %v508, %v313
  %v545 = vadd.f32 %v511, %v313
  %v546 = vadd.f32 %v514, %v313
  %v547 = vadd.f32 %v517, %v313
  %v548 = vadd.f32 %v520, %v313
  %v549 = vadd.f32 %v523, %v313
  %v550 = vadd.f32 %v526, %v313
  %v551 = vadd.f32 %v529, %v313
  %v552 = vadd.f32 %v532, %v313
  %v553 = vadd.f32 %v535, %v313
  %v554 = vadd.f32 %v538, %v313
  %v555 = vxor.u32 %v539, 2147483648
  %v556 = vxor.u32 %v540, 2147483648
  %v557 = vxor.u32 %v541, 2147483648
  %v558 = vxor.u32 %v542, 2147483648
  %v559 = vxor.u32 %v543, 2147483648
  %v560 = vxor.u32 %v544, 2147483648
  %v561 = vxor.u32 %v545, 2147483648
  %v562 = vxor.u32 %v546, 2147483648
  %v563 = vxor.u32 %v547, 2147483648
  %v564 = vxor.u32 %v548, 2147483648
  %v565 = vxor.u32 %v549, 2147483648
  %v566 = vxor.u32 %v550, 2147483648
  %v567 = vxor.u32 %v551, 2147483648
  %v568 = vxor.u32 %v552, 2147483648
  %v569 = vxor.u32 %v553, 2147483648
  %v570 = vxor.u32 %v554, 2147483648
  %v571 = vmul.f32 %v555, 1.442695
  %v572 = vpow.pop %v571
  %v573 = vmul.f32 %v556, 1.442695
  %v574 = vpow.pop %v573
  %v575 = vmul.f32 %v557, 1.442695
  %v576 = vpow.pop %v575
  %v577 = vmul.f32 %v558, 1.442695
  %v578 = vpow.pop %v577
  %v579 = vmul.f32 %v559, 1.442695
  %v580 = vpow.pop %v579
  %v581 = vmul.f32 %v560, 1.442695
  %v582 = vpow.pop %v581
  %v583 = vmul.f32 %v561, 1.442695
  %v584 = vpow.pop %v583
  %v585 = vmul.f32 %v562, 1.442695
  %v586 = vpow.pop %v585
  %v587 = vmul.f32 %v563, 1.442695
  %v588 = vpow.pop %v587
  %v589 = vmul.f32 %v564, 1.442695
  %v590 = vpow.pop %v589
  %v591 = vmul.f32 %v565, 1.442695
  %v592 = vpow.pop %v591
  %v593 = vmul.f32 %v566, 1.442695
  %v594 = vpow.pop %v593
  %v595 = vmul.f32 %v567, 1.442695
  %v596 = vpow.pop %v595
  %v597 = vmul.f32 %v568, 1.442695
  %v598 = vpow.pop %v597
  %v599 = vmul.f32 %v569, 1.442695
  %v600 = vpow.pop %v599
  %v601 = vmul.f32 %v570, 1.442695
  %v602 = vpow.pop %v601
  %v603 = vadd.f32 %v572, 1.0
  %v604 = vadd.f32 %v574, 1.0
  %v605 = vadd.f32 %v576, 1.0
  %v606 = vadd.f32 %v578, 1.0
  %v607 = vadd.f32 %v580, 1.0
  %v608 = vadd.f32 %v582, 1.0
  %v609 = vadd.f32 %v584, 1.0
  %v610 = vadd.f32 %v586, 1.0
  %v611 = vadd.f32 %v588, 1.0
  %v612 = vadd.f32 %v590, 1.0
  %v613 = vadd.f32 %v592, 1.0
  %v614 = vadd.f32 %v594, 1.0
  %v615 = vadd.f32 %v596, 1.0
  %v616 = vadd.f32 %v598, 1.0
  %v617 = vadd.f32 %v600, 1.0
  %v618 = vadd.f32 %v602, 1.0
  %v619 = vrcp.pop %v603
  %v620 = vmul.f32 1.0, %v619
  %v621 = vrcp.pop %v604
  %v622 = vmul.f32 1.0, %v621
  %v623 = vrcp.pop %v605
  %v624 = vmul.f32 1.0, %v623
  %v625 = vrcp.pop %v606
  %v626 = vmul.f32 1.0, %v625
  %v627 = vrcp.pop %v607
  %v628 = vmul.f32 1.0, %v627
  %v629 = vrcp.pop %v608
  %v630 = vmul.f32 1.0, %v629
  %v631 = vrcp.pop %v609
  %v632 = vmul.f32 1.0, %v631
  %v633 = vrcp.pop %v610
  %v634 = vmul.f32 1.0, %v633
  %v635 = vrcp.pop %v611
  %v636 = vmul.f32 1.0, %v635
  %v637 = vrcp.pop %v612
  %v638 = vmul.f32 1.0, %v637
  %v639 = vrcp.pop %v613
  %v640 = vmul.f32 1.0, %v639
  %v641 = vrcp.pop %v614
  %v642 = vmul.f32 1.0, %v641
  %v643 = vrcp.pop %v615
  %v644 = vmul.f32 1.0, %v643
  %v645 = vrcp.pop %v616
  %v646 = vmul.f32 1.0, %v645
  %v647 = vrcp.pop %v617
  %v648 = vmul.f32 1.0, %v647
  %v649 = vrcp.pop %v618
  %v650 = vmul.f32 1.0, %v649
  %vm651 = vcmask 15368
  %652 = vst.msk [vmem:[%s5] sm:$0xff] %vm651, %v620
  %653 = vst.msk [vmem:[%s5 + $0x8] sm:$0xff] %vm651, %v622
  %654 = vst.msk [vmem:[%s5 + $0x10] sm:$0xff] %vm651, %v624
  %655 = vst.msk [vmem:[%s5 + $0x18] sm:$0xff] %vm651, %v626
  %656 = vst.msk [vmem:[%s5 + $0x20] sm:$0xff] %vm651, %v628
  %657 = vst.msk [vmem:[%s5 + $0x28] sm:$0xff] %vm651, %v630
  %658 = vst.msk [vmem:[%s5 + $0x30] sm:$0xff] %vm651, %v632
  %659 = vst.msk [vmem:[%s5 + $0x38] sm:$0xff] %vm651, %v634
  %660 = vst.msk [vmem:[%s5 + $0x40] sm:$0xff] %vm651, %v636
  %661 = vst.msk [vmem:[%s5 + $0x48] sm:$0xff] %vm651, %v638
  %662 = vst.msk [vmem:[%s5 + $0x50] sm:$0xff] %vm651, %v640
  %663 = vst.msk [vmem:[%s5 + $0x58] sm:$0xff] %vm651, %v642
  %664 = vst.msk [vmem:[%s5 + $0x60] sm:$0xff] %vm651, %v644
  %665 = vst.msk [vmem:[%s5 + $0x68] sm:$0xff] %vm651, %v646
  %666 = vst.msk [vmem:[%s5 + $0x70] sm:$0xff] %vm651, %v648
  %667 = vst.msk [vmem:[%s5 + $0x78] sm:$0xff] %vm651, %v650
  // Predicated region
  $region22: #{tpu_custom_call.1} parent=0 // pred_check
    _
  $region23: #{tpu_custom_call.1} parent=0 // pred_check_branch
    %669 = sbr.rel (0) target = $region25
  $region24: #{tpu_custom_call.1} parent=0 // pred_region
    _
  $region25: #{tpu_custom_call.1} parent=0 // pred_fallthru
    _
  // Predicated region
  $region26: #{tpu_custom_call.1} parent=0 // pred_check
    _
  $region27: #{tpu_custom_call.1} parent=0 // pred_check_branch
    %671 = sbr.rel (0) target = $region29
  $region28: #{tpu_custom_call.1} parent=0 // pred_region
    _
  $region29: #{tpu_custom_call.1} parent=0 // pred_fallthru
    _

</llo_original>
